<compile_context>
chip_gen: v7x
topology: tpu7x:2x2x1
jax: 0.10.0
libtpu: 0.0.40
codegen_flags: <defaults>
</compile_context>

<pallas_src>
import functools
import math

import jax
import jax.numpy as jnp
from jax import lax
from jax.experimental import pallas as pl
from jax.experimental.pallas import tpu as pltpu


def _pick_tile(n, target):
    """Largest tile <= target dividing n; prefer multiples of 256, 128, then 8."""
    if n <= target:
        return n
    for pref in (256, 128, 8):
        t = (target // pref) * pref
        while t >= pref:
            if n % t == 0:
                return t
            t -= pref
    # TODO(synk): prime/odd n falls back to one full-size block; a cdiv grid
    # with a pl.when-masked ragged tail would be safer for huge sequences.
    return n


# ---------------------------------------------------------------------------
# Linear projection kernel (tiled over rows, bf16 MXU / f32 accumulate)
# ---------------------------------------------------------------------------
def _linear_kernel(x_ref, w_ref, b_ref, o_ref, *, compute_dtype):
    x = x_ref[...].astype(compute_dtype)          # bf16 operands for the MXU
    acc = jnp.dot(x, w_ref[...], preferred_element_type=jnp.float32)
    o_ref[...] = (acc + b_ref[...]).astype(o_ref.dtype)


def pallas_linear(x2d, wT, b, *, out_dtype, compute_dtype, tile_m=512):
    """x2d: (M, d_in) f32; wT: (d_in, d_out) pre-cast; b: (d_out,) f32."""
    M, d_in = x2d.shape
    d_out = wT.shape[1]
    b2d = b.reshape(1, d_out).astype(jnp.float32)

    tm = _pick_tile(M, tile_m)
    return pl.pallas_call(
        functools.partial(_linear_kernel, compute_dtype=compute_dtype),
        out_shape=jax.ShapeDtypeStruct((M, d_out), out_dtype),
        grid=(M // tm,),
        in_specs=[
            pl.BlockSpec((tm, d_in), lambda i: (i, 0)),
            pl.BlockSpec((d_in, d_out), lambda i: (0, 0)),
            pl.BlockSpec((1, d_out), lambda i: (0, 0)),
        ],
        out_specs=pl.BlockSpec((tm, d_out), lambda i: (i, 0)),
        compiler_params=pltpu.CompilerParams(
            dimension_semantics=("parallel",)),
    )(x2d, wT, b2d)


# ---------------------------------------------------------------------------
# Flash-style MHA kernel, heads fused on the lane axis, fc_o fused in finalize
# ---------------------------------------------------------------------------
def _mha_flash_fco_kernel(q_ref, k_ref, v_ref, woT_ref, bo_ref, o_ref,
                          m_sc, l_sc, acc_sc, *, h, d_k, d_v, compute_dtype):
    ki = pl.program_id(2)

    @pl.when(ki == 0)
    def _():
        m_sc[...] = jnp.full(m_sc.shape, -jnp.inf, dtype=m_sc.dtype)
        l_sc[...] = jnp.zeros(l_sc.shape, l_sc.dtype)
        acc_sc[...] = jnp.zeros(acc_sc.shape, acc_sc.dtype)

    # All heads handled in one grid step; lane slices are static.
    # TODO(synk): for large h, move heads onto a grid axis (or head-batch the
    # matmuls) to bound vreg live ranges of this fully unrolled loop.
    for hd in range(h):
        # 1/sqrt(d_k) is pre-folded into fc_q's weight; no per-step scale mul.
        q = q_ref[0, :, hd * d_k:(hd + 1) * d_k]          # bf16
        k = k_ref[0, :, hd * d_k:(hd + 1) * d_k]          # bf16
        v = v_ref[0, :, hd * d_v:(hd + 1) * d_v]          # bf16

        # q @ k^T without materializing a transpose; bf16 MXU, f32 accumulate.
        s = lax.dot_general(q, k, (((1,), (1,)), ((), ())),
                            preferred_element_type=jnp.float32)   # (tq, tk)

        m_prev = m_sc[hd]                                          # (tq, 1)
        m_new = jnp.maximum(m_prev, jnp.max(s, axis=-1, keepdims=True))
        alpha = jnp.exp(m_prev - m_new)
        p = jnp.exp(s - m_new)

        l_sc[hd] = alpha * l_sc[hd] + jnp.sum(p, axis=-1, keepdims=True)
        acc_prev = acc_sc[:, hd * d_v:(hd + 1) * d_v]
        acc_sc[:, hd * d_v:(hd + 1) * d_v] = alpha * acc_prev + jnp.dot(
            p.astype(compute_dtype), v, preferred_element_type=jnp.float32)
        m_sc[hd] = m_new

    # TODO(synk): attention_mask / attention_weights would be applied to `s`
    # before the online softmax (guard fully-masked rows: exp(-inf - -inf)=NaN).
    # TODO(synk): nn.Dropout(0.1) on attention weights is eval-mode identity.

    @pl.when(ki == pl.num_programs(2) - 1)
    def _():
        for hd in range(h):
            inv = pl.reciprocal(l_sc[hd], approx=True)     # EUP slot, ~free
            acc_sc[:, hd * d_v:(hd + 1) * d_v] = (
                acc_sc[:, hd * d_v:(hd + 1) * d_v] * inv)
        # fc_o fused: no HBM round trip of (b, nq, h*d_v), no extra launch.
        attn = acc_sc[...].astype(compute_dtype)            # (tq, h*d_v)
        proj = jnp.dot(attn, woT_ref[...], preferred_element_type=jnp.float32)
        o_ref[0] = (proj + bo_ref[...]).astype(o_ref.dtype)


def _attn_vmem_bytes(tq, tk, h, d_k, d_v, d_model, in_bytes):
    dbl = 2 * (tq * h * d_k * in_bytes          # q block
               + tk * h * d_k * in_bytes        # k block
               + tk * h * d_v * in_bytes        # v block
               + h * d_v * d_model * in_bytes   # resident w_oT
               + d_model * 4                    # b_o
               + tq * d_model * 4)              # output block
    scratch = (2 * h * tq + tq * h * d_v) * 4
    return dbl + scratch


def pallas_attention_fco(q, k, v, w_oT, b_o2d, h, d_k, d_v, d_model, *,
                         tile_q=256, tile_k=512, out_dtype=jnp.float32):
    """q: (b, nq, h*d_k), k: (b, nk, h*d_k), v: (b, nk, h*d_v) -> (b, nq, d_model)."""
    b, nq, _ = q.shape
    nk = k.shape[1]
    compute_dtype = q.dtype
    in_bytes = jnp.dtype(compute_dtype).itemsize

    tq = _pick_tile(nq, tile_q)
    tk = _pick_tile(nk, tile_k)

    # Keep >= 2 parallel grid steps so both v7x TensorCores get work.
    if (b * (nq // tq) < 2 and tq % 2 == 0
            and (tq // 2) % 8 == 0 and nq % (tq // 2) == 0):
        tq //= 2

    # VMEM budgeting: shrink K/V tiles (then Q) until the double-buffered
    # working set fits 40 MiB (safe on v7x's 64 MiB VMEM), then raise the
    # scoped limit explicitly (v5e default is only 16 MiB).
    budget = 40 * 1024 * 1024
    while (_attn_vmem_bytes(tq, tk, h, d_k, d_v, d_model, in_bytes) > budget
           and tk >= 256 and (tk // 2) % 8 == 0):
        tk //= 2
    while (_attn_vmem_bytes(tq, tk, h, d_k, d_v, d_model, in_bytes) > budget
           and tq >= 256 and (tq // 2) % 8 == 0):
        tq //= 2
    est = _attn_vmem_bytes(tq, tk, h, d_k, d_v, d_model, in_bytes)
    vmem_limit = int(min(max(2 * est, 32 * 1024 * 1024), 48 * 1024 * 1024))

    grid = (b, nq // tq, nk // tk)              # KV reduction axis last

    kernel = functools.partial(_mha_flash_fco_kernel, h=h, d_k=d_k, d_v=d_v,
                               compute_dtype=compute_dtype)
    return pl.pallas_call(
        kernel,
        out_shape=jax.ShapeDtypeStruct((b, nq, d_model), out_dtype),
        grid=grid,
        in_specs=[
            pl.BlockSpec((1, tq, h * d_k), lambda bi, qi, ki: (bi, qi, 0)),
            pl.BlockSpec((1, tk, h * d_k), lambda bi, qi, ki: (bi, ki, 0)),
            pl.BlockSpec((1, tk, h * d_v), lambda bi, qi, ki: (bi, ki, 0)),
            pl.BlockSpec((h * d_v, d_model), lambda bi, qi, ki: (0, 0)),
            pl.BlockSpec((1, d_model), lambda bi, qi, ki: (0, 0)),
        ],
        out_specs=pl.BlockSpec((1, tq, d_model),
                               lambda bi, qi, ki: (bi, qi, 0)),
        scratch_shapes=[
            pltpu.VMEM((h, tq, 1), jnp.float32),      # running max per head
            pltpu.VMEM((h, tq, 1), jnp.float32),      # running denom per head
            pltpu.VMEM((tq, h * d_v), jnp.float32),   # f32 output accumulator
        ],
        compiler_params=pltpu.CompilerParams(
            dimension_semantics=("parallel", "parallel", "arbitrary"),
            vmem_limit_bytes=vmem_limit),
    )(q, k, v, w_oT, b_o2d)


# ---------------------------------------------------------------------------
# Module wrapper (one-time weight transpose/cast/scale-fold; no HBM permutes)
# ---------------------------------------------------------------------------
class ScaledDotProductAttentionPallas:
    def __init__(self, d_model, d_k, d_v, h, key, compute_dtype=jnp.bfloat16):
        self.d_model, self.d_k, self.d_v, self.h = d_model, d_k, d_v, h
        self.compute_dtype = compute_dtype
        ks = jax.random.split(key, 4)
        # nn.Linear init: weight (out, in) ~ Normal(std=0.001), bias = 0
        w_q = 0.001 * jax.random.normal(ks[0], (h * d_k, d_model), jnp.float32)
        w_k = 0.001 * jax.random.normal(ks[1], (h * d_k, d_model), jnp.float32)
        w_v = 0.001 * jax.random.normal(ks[2], (h * d_v, d_model), jnp.float32)
        w_o = 0.001 * jax.random.normal(ks[3], (d_model, h * d_v), jnp.float32)

        scale = 1.0 / math.sqrt(d_k)
        # Fold 1/sqrt(d_k) into fc_q once; pre-transpose + pre-cast all weights.
        self.w_qT = (jnp.transpose(w_q) * scale).astype(compute_dtype)
        self.b_q = jnp.zeros((h * d_k,), jnp.float32) * scale
        self.w_kT = jnp.transpose(w_k).astype(compute_dtype)
        self.b_k = jnp.zeros((h * d_k,), jnp.float32)
        self.w_vT = jnp.transpose(w_v).astype(compute_dtype)
        self.b_v = jnp.zeros((h * d_v,), jnp.float32)
        self.w_oT = jnp.transpose(w_o).astype(compute_dtype)   # (h*d_v, d_model)
        self.b_o2d = jnp.zeros((1, d_model), jnp.float32)

    def __call__(self, queries, keys, values):
        b_s, nq, _ = queries.shape
        nk = keys.shape[1]
        h, d_k, d_v = self.h, self.d_k, self.d_v
        cd = self.compute_dtype

        # Projections stay in (b, n, h*d) layout (contiguous reshapes only),
        # emitted in bf16 so attention streams half the HBM bytes for K/V.
        # TODO(synk): when keys is values, fuse fc_k/fc_v into one matmul over
        # concat([w_k, w_v]) so the activation is read once and the output
        # slab is 2*h*d lanes wide (lane-dense stores).
        q = pallas_linear(queries.reshape(b_s * nq, self.d_model),
                          self.w_qT, self.b_q, out_dtype=cd, compute_dtype=cd)
        k = pallas_linear(keys.reshape(b_s * nk, self.d_model),
                          self.w_kT, self.b_k, out_dtype=cd, compute_dtype=cd)
        v = pallas_linear(values.reshape(b_s * nk, self.d_model),
                          self.w_vT, self.b_v, out_dtype=cd, compute_dtype=cd)
        q = q.reshape(b_s, nq, h * d_k)
        k = k.reshape(b_s, nk, h * d_k)
        v = v.reshape(b_s, nk, h * d_v)

        # Flash attention with fc_o fused into the finalize; output already
        # (b, nq, d_model) in f32.
        return pallas_attention_fco(q, k, v, self.w_oT, self.b_o2d,
                                    h, d_k, d_v, self.d_model)


if __name__ == "__main__":
    key = jax.random.PRNGKey(0)
    k_params, k_q, k_k, k_v = jax.random.split(key, 4)

    d_model, d_k, d_v, h = 32, 16, 16, 4
    b_s, nq, nk = 2, 8, 8

    module = ScaledDotProductAttentionPallas(d_model, d_k, d_v, h, k_params)

    queries = jax.random.normal(k_q, (b_s, nq, d_model), jnp.float32)
    keys_in = jax.random.normal(k_k, (b_s, nk, d_model), jnp.float32)
    values = jax.random.normal(k_v, (b_s, nk, d_model), jnp.float32)

    out = module(queries, keys_in, values)
    jax.block_until_ready(out)
    assert out.shape == (b_s, nq, d_model)
    assert bool(jnp.all(jnp.isfinite(out)))
    print("KERNEL_OK")
</pallas_src>

<mosaic_0001>
module attributes {stable_mosaic.version = 11 : i64} {
  func.func @_linear_kernel(%arg0: i32, %arg1: memref<16x32xf32, #tpu.memory_space<vmem>>, %arg2: memref<32x64xbf16, #tpu.memory_space<vmem>>, %arg3: memref<1x64xf32, #tpu.memory_space<vmem>>, %arg4: memref<16x64xbf16, #tpu.memory_space<vmem>>) attributes {dimension_semantics = [#tpu.dimension_semantics<parallel>], iteration_bounds = array<i64: 1>, scalar_prefetch = 0 : i64, scratch_operands = 0 : i64, tpu.core_type = #tpu.core_type<tc>, window_params = [{transform_indices = @transform_0, window_bounds = array<i64: 16, 32>}, {pipeline_mode = #tpu.pipeline_mode<synchronous>, transform_indices = @transform_1, window_bounds = array<i64: 32, 64>}, {pipeline_mode = #tpu.pipeline_mode<synchronous>, transform_indices = @transform_2, window_bounds = array<i64: 1, 64>}, {transform_indices = @transform_3, window_bounds = array<i64: 16, 64>}]} {
    %c0 = arith.constant 0 : index
    %c0_0 = arith.constant 0 : index
    %0 = vector.load %arg1[%c0, %c0_0] : memref<16x32xf32, #tpu.memory_space<vmem>>, vector<16x32xf32>
    %1 = arith.truncf %0 : vector<16x32xf32> to vector<16x32xbf16>
    %c0_1 = arith.constant 0 : index
    %c0_2 = arith.constant 0 : index
    %2 = vector.load %arg2[%c0_1, %c0_2] : memref<32x64xbf16, #tpu.memory_space<vmem>>, vector<32x64xbf16>
    %cst = arith.constant dense<0.000000e+00> : vector<16x64xf32>
    %3 = tpu.matmul %1, %2, %cst {dimension_numbers = #tpu.dot_dimension_numbers<[1], [0], [0], [1], [0, 0, 1, 1], [], []>} : vector<16x32xbf16>, vector<32x64xbf16>, vector<16x64xf32> -> vector<16x64xf32>
    %c0_3 = arith.constant 0 : index
    %c0_4 = arith.constant 0 : index
    %4 = vector.load %arg3[%c0_3, %c0_4] : memref<1x64xf32, #tpu.memory_space<vmem>>, vector<1x64xf32>
    %5 = vector.broadcast %4 : vector<1x64xf32> to vector<16x64xf32>
    %6 = arith.addf %3, %5 : vector<16x64xf32>
    %7 = arith.truncf %6 : vector<16x64xf32> to vector<16x64xbf16>
    %c0_5 = arith.constant 0 : index
    %c0_6 = arith.constant 0 : index
    %8 = vector.load %arg4[%c0_5, %c0_6] : memref<16x64xbf16, #tpu.memory_space<vmem>>, vector<16x64xbf16>
    tpu.vector_store %arg4[%c0_5, %c0_6], %7 {strides = array<i32>} : memref<16x64xbf16, #tpu.memory_space<vmem>>, vector<16x64xbf16>,
    return
  }
  func.func @transform_0(%arg0: i32) -> (i32, i32) {
    %c0_i32 = arith.constant 0 : i32
    %c0_i32_0 = arith.constant 0 : i32
    return %arg0, %c0_i32 : i32, i32
  }
  func.func @transform_1(%arg0: i32) -> (i32, i32) {
    %c0_i32 = arith.constant 0 : i32
    %c0_i32_0 = arith.constant 0 : i32
    %c0_i32_1 = arith.constant 0 : i32
    return %c0_i32, %c0_i32_0 : i32, i32
  }
  func.func @transform_2(%arg0: i32) -> (i32, i32) {
    %c0_i32 = arith.constant 0 : i32
    %c0_i32_0 = arith.constant 0 : i32
    %c0_i32_1 = arith.constant 0 : i32
    return %c0_i32, %c0_i32_0 : i32, i32
  }
  func.func @transform_3(%arg0: i32) -> (i32, i32) {
    %c0_i32 = arith.constant 0 : i32
    %c0_i32_0 = arith.constant 0 : i32
    return %arg0, %c0_i32 : i32, i32
  }
}

</mosaic_0001>

<llo_original>
// kernel: tpu_custom_call.1
$region0: #{tpu_custom_call.1}
  #allocation0 [shape = 'u32[]', space=smem, size = 0x4, offset = 0x4, fixed_abs, tag = 'smem constant byte address 0x4 - core index']
  #allocation1 [shape = 'u32[144,128]{1,0:T(1,128)}', space=vmem, size = 0x12000, scoped, tag = 'internal scratch']
  %s0 = inlined_call_operand.hbm [shape: f32[16,32], index: 0, kind: input, shape index: {}]
  %s1 = inlined_call_operand.hbm [shape: bf16[32,64], index: 1, kind: input, shape index: {}]
  %s2 = inlined_call_operand.vmem [shape: f32[1,64], index: 2, kind: input, shape index: {}]
  %s3 = inlined_call_operand.hbm [shape: bf16[16,64], index: 3, kind: output, shape index: {}]
  %s4 = sld [smem:[#allocation0]]
  $region30: #{tpu_custom_call.1} parent=0
    _
  %s6 = ssub.s32 1, %s4
  %s7 = scalar_select 0, %s6, %s4
  $region1: #{tpu_custom_call.1} parent=0
    #allocation2 [shape = 'u8[8192]{0}', space=vmem, size = 0x2000, scoped, tag = 'input window, operand 0, single buffered']
    #allocation3 [shape = 's32[1]{0}', space=sflag, size = 0x4, scoped, tag = 'scoped memory for tpu_custom_call.1']
    #allocation4 [shape = 's32[1]{0}', space=sflag, size = 0x4, scoped, tag = 'scoped memory for tpu_custom_call.1']
    #allocation5 [shape = 'u8[8192]{0}', space=vmem, size = 0x2000, scoped, tag = 'input window, operand 1, single buffered']
    #allocation6 [shape = 's32[1]{0}', space=sflag, size = 0x4, scoped, tag = 'scoped memory for tpu_custom_call.1']
    #allocation7 [shape = 'u8[4096]{0}', space=vmem, size = 0x1000, scoped, tag = 'output window, operand 0, single buffered']
    %8 = vsyncpa [#allocation3], 0
    %9 = vsyncpa [#allocation6], 0
    %10 = vsyncpa [#allocation4], 0
    // Predicated region
    $region2: #{tpu_custom_call.1} parent=1 // pred_check
      _
    $region3: #{tpu_custom_call.1} parent=1 // pred_check_branch
      %12 = sbr.rel (0) target = $region5
    $region4: #{tpu_custom_call.1} parent=1 // pred_region
      %s14 = ssub.s32 256, 256
      %15 = vsyncadd [#allocation3], %s14
      %s16 = sshll.u32 [#allocation2], 4
      %s17 = int_to_ptr.vmem [resolvable:$true] %s16
      %22 = dma.hbm_to_vmem [thread:$0]  %s0, 256, %s17, [#allocation3], 128, 128, 8
    $region5: #{tpu_custom_call.1} parent=1 // pred_fallthru
      _
    // Predicated region
    $region6: #{tpu_custom_call.1} parent=1 // pred_check
      _
    $region7: #{tpu_custom_call.1} parent=1 // pred_check_branch
      %24 = sbr.rel (0) target = $region9
    $region8: #{tpu_custom_call.1} parent=1 // pred_region
      %s26 = ssub.s32 256, 256
      %27 = vsyncadd [#allocation6], %s26
      %s28 = sshll.u32 [#allocation5], 4
      %s29 = int_to_ptr.vmem [resolvable:$true] %s28
      %34 = dma.hbm_to_vmem [thread:$0]  %s1, 256, %s29, [#allocation6], 64, 64, 4
    $region9: #{tpu_custom_call.1} parent=1 // pred_fallthru
      _
    // Predicated region
    $region10: #{tpu_custom_call.1} parent=1 // pred_check
      _
    $region11: #{tpu_custom_call.1} parent=1 // pred_check_branch
      %36 = sbr.rel (0) target = $region13
    $region12: #{tpu_custom_call.1} parent=1 // pred_region
      _
    $region13: #{tpu_custom_call.1} parent=1 // pred_fallthru
      _
    // Predicated region
    $region14: #{tpu_custom_call.1} parent=1 // pred_check
      _
    $region15: #{tpu_custom_call.1} parent=1 // pred_check_branch
      %38 = sbr.rel (0) target = $region17
    $region16: #{tpu_custom_call.1} parent=1 // pred_region
      %39 = dma.done [#allocation3], 256
    $region17: #{tpu_custom_call.1} parent=1 // pred_fallthru
      _
    // Predicated region
    $region18: #{tpu_custom_call.1} parent=1 // pred_check
      _
    $region19: #{tpu_custom_call.1} parent=1 // pred_check_branch
      %41 = sbr.rel (0) target = $region21
    $region20: #{tpu_custom_call.1} parent=1 // pred_region
      %42 = dma.done [#allocation6], 256
    $region21: #{tpu_custom_call.1} parent=1 // pred_fallthru
      _
    %v44 = vld [vmem:[#allocation2] sm:$0xff]
    %v45 = vld [vmem:[#allocation2 + $0x8] sm:$0xff]
    %v46 = vpack.c.bf16 %v45, %v44
    %v47 = vld [vmem:[#allocation5] sm:$0xf]
    %v48 = vld [vmem:[#allocation5 + $0x4] sm:$0xf]
    %v49 = vld [vmem:[#allocation5 + $0x8] sm:$0xf]
    %v50 = vld [vmem:[#allocation5 + $0xc] sm:$0xf]
    %v51 = vld [vmem:[%s2] sm:$0x1]
    %v53 = vlaneseq
    %v54 = vshrl.u32 %v53, 7
    %v55 = vsub.s32 0, %v54
    %v56 = vrot.slane %v51, %v55
    %v62 = vunpack.c.l.b16 %v47
    %v63 = vunpack.c.l.b16 %v48
    %v64 = vunpack.c.l.b16 %v49
    %v65 = vunpack.c.l.b16 %v50
    %v66 = vpack.c.b16 %v63, %v62
    %v67 = vpack.c.b16 %v65, %v64
    %vm70 = vcmask 261120
    %v72 = vsel %vm70, %v46, 0
    %74 = vmatprep.subr.bf16.mxu0 0
    %75 = vmatpush1.bf16.msra.mxu0 %v66
    %76 = vmatprep.subr.bf16.mxu0 0
    %77 = vmatpush1.bf16.msra.mxu0 %v67
    %78 = vmatprep.subr.bf16.mxu0 0
    %79 = vmatpush1.bf16.msra.mxu0 0
    %80 = vmatprep.subr.bf16.mxu0 0
    %81 = vmatpush1.bf16.msra.mxu0 0
    %82 = vmatprep.subr.bf16.mxu0 0
    %83 = vmatpush1.bf16.msra.mxu0 0
    %84 = vmatprep.subr.bf16.mxu0 0
    %85 = vmatpush1.bf16.msra.mxu0 0
    %86 = vmatprep.subr.bf16.mxu0 0
    %87 = vmatpush1.bf16.msra.mxu0 0
    %88 = vmatprep.subr.bf16.mxu0 0
    %89 = vmatpush1.bf16.msra.mxu0 0
    %90 = vmatprep.subr.bf16.mxu0 0
    %91 = vmatpush1.bf16.msra.mxu0 0
    %92 = vmatprep.subr.bf16.mxu0 0
    %93 = vmatpush1.bf16.msra.mxu0 0
    %94 = vmatprep.subr.bf16.mxu0 0
    %95 = vmatpush1.bf16.msra.mxu0 0
    %96 = vmatprep.subr.bf16.mxu0 0
    %97 = vmatpush1.bf16.msra.mxu0 0
    %98 = vmatprep.subr.bf16.mxu0 0
    %99 = vmatpush1.bf16.msra.mxu0 0
    %100 = vmatprep.subr.bf16.mxu0 0
    %101 = vmatpush1.bf16.msra.mxu0 0
    %102 = vmatprep.subr.bf16.mxu0 0
    %103 = vmatpush1.bf16.msra.mxu0 0
    %104 = vmatprep.subr.bf16.mxu0 0
    %105 = vmatpush1.bf16.msra.mxu0 0
    %106 = vmatprep.mubr.bf16.mxu0 0
    %107 = vmatmul.mubr.bf16.gmra.mrb[0].mxu0 %v72
    %v108 = vpop.f32.mrb[0].mxu0
    %v109 = vadd.f32 %v56, %v108
    %v110 = vpop.f32.mrb[0].mxu0
    %v111 = vpop.f32.mrb[0].mxu0
    %v112 = vadd.f32 %v56, %v111
    %v113 = vpop.f32.mrb[0].mxu0
    %114 = vdwg.mxu0
    %v115 = vpack.c.bf16 %v112, %v109
    %v117 = vunpack.c.l.b16 %v115
    %v118 = vunpack.c.h.b16 %v115
    %v119 = vpack.c.b16 %v117, %v117
    %v120 = vpack.c.b16 %v118, %v118
    %vm123 = vcmask 519168
    %124 = vst.msk [vmem:[#allocation7] sm:$0xf] %vm123, %v119
    %125 = vst.msk [vmem:[#allocation7 + $0x4] sm:$0xf] %vm123, %v120
    // Predicated region
    $region22: #{tpu_custom_call.1} parent=1 // pred_check
      _
    $region23: #{tpu_custom_call.1} parent=1 // pred_check_branch
      %127 = sbr.rel (0) target = $region25
    $region24: #{tpu_custom_call.1} parent=1 // pred_region
      %s129 = ssub.s32 128, 128
      %130 = vsyncadd [#allocation4], %s129
      %s131 = sshll.u32 [#allocation7], 4
      %s132 = int_to_ptr.vmem [resolvable:$true] %s131
      %137 = dma.vmem_to_hbm [thread:$0]  %s132, 128, %s3, [#allocation4], 64, 64, 4
    $region25: #{tpu_custom_call.1} parent=1 // pred_fallthru
      _
    // Predicated region
    $region26: #{tpu_custom_call.1} parent=1 // pred_check
      _
    $region27: #{tpu_custom_call.1} parent=1 // pred_check_branch
      %139 = sbr.rel (0) target = $region29
    $region28: #{tpu_custom_call.1} parent=1 // pred_region
      %140 = dma.done [#allocation4], 128
    $region29: #{tpu_custom_call.1} parent=1 // pred_fallthru
      _
    %141 = vsyncpa [#allocation3], 1
    %142 = vsyncpa [#allocation6], 1
    %143 = vsyncpa [#allocation4], 1

</llo_original>
